<compile_context>
chip_gen: v7x
topology: tpu7x:2x2x1
jax: 0.10.0
libtpu: 0.0.40
codegen_flags: <defaults>
</compile_context>

<pallas_src>
import jax
import jax.numpy as jnp
from jax.experimental import pallas as pl
from jax.experimental.pallas import tpu as pltpu


def _round_up(x, m):
    return ((x + m - 1) // m) * m


def _cdiv(a, b):
    return (a + b - 1) // b


# ---------------------------------------------------------------------------
# Kernel
# ---------------------------------------------------------------------------
def qnetwork_kernel(s_ref, a_ref, w1s_ref, w1a_ref, b1_ref,
                    w2_ref, b2_ref, w3t_ref, b3_ref, o_ref):
    # Layer 1 (fused concat): two f32 MXU dots accumulating into the same
    # f32 value.  K is tiny (state_dim / action_dim) so f32 costs nothing and
    # preserves precision for the critic.
    h1 = jnp.dot(s_ref[...], w1s_ref[...], preferred_element_type=jnp.float32)
    h1 = h1 + jnp.dot(a_ref[...], w1a_ref[...],
                      preferred_element_type=jnp.float32)
    h1 = jnp.maximum(h1 + b1_ref[...], 0.0)

    # Layer 2: in-kernel bf16 cast (free VPU work), f32 accumulation on MXU.
    h2 = jnp.dot(h1.astype(w2_ref.dtype), w2_ref[...],
                 preferred_element_type=jnp.float32)
    h2 = jnp.maximum(h2 + b2_ref[...], 0.0)

    # Layer 3, computed transposed so the batch lands on the lane axis:
    #   (1, 128) . (tb, 128)^T -> (1, tb)   => lane-dense output store.
    q_t = jax.lax.dot_general(
        w3t_ref[...], h2.astype(w3t_ref.dtype),
        dimension_numbers=(((1,), (1,)), ((), ())),
        preferred_element_type=jnp.float32)           # (1, tb)
    o_ref[0] = q_t + b3_ref[...]                      # o_ref block: (1, 1, tb)


# ---------------------------------------------------------------------------
# One-time parameter preparation (hoisted out of the per-call path)
# ---------------------------------------------------------------------------
def prepare_params(params, state_dim, *, compute_dtype=jnp.bfloat16):
    """Split/transpose/cast weights once; reuse across all forward calls."""
    w1, b1, w2, b2, w3, b3 = params
    w1 = jnp.asarray(w1, jnp.float32)
    w1_s = w1[:state_dim]                                    # (state_dim, 256) f32
    w1_a = w1[state_dim:]                                    # (action_dim,256) f32
    b1 = jnp.asarray(b1, jnp.float32).reshape(1, -1)         # (1, 256)
    w2c = jnp.asarray(w2, compute_dtype)                     # (256, 128) bf16
    b2 = jnp.asarray(b2, jnp.float32).reshape(1, -1)         # (1, 128)
    w3t = jnp.asarray(w3, compute_dtype).T                   # (1, 128) bf16
    b3 = jnp.asarray(b3, jnp.float32).reshape(1, 1)          # (1, 1)
    return (w1_s, w1_a, b1, w2c, b2, w3t, b3)


# ---------------------------------------------------------------------------
# Generation-aware batch tiling
# ---------------------------------------------------------------------------
def _choose_tiling(batch):
    try:
        kind = jax.devices()[0].device_kind.lower()
    except Exception:  # pragma: no cover
        kind = ""
    multi_tc = "v7" in kind            # v7x: 2 TensorCores share one chip
    max_tb = 4096                      # f32 h1/h2 temporaries stay << 16 MiB scoped VMEM
    min_tiles = 2 if multi_tc else 1   # single big tile on single-TC v5e/v6e
    n_tiles = max(min_tiles, _cdiv(batch, max_tb))
    if multi_tc and n_tiles % 2:
        n_tiles += 1                   # even tile count -> both TCs stay busy
    # Never allocate tiles that would be 100% padding (tiny batches).
    n_tiles = min(n_tiles, max(1, _cdiv(batch, 16)))
    tb = _round_up(_cdiv(batch, n_tiles), 16)   # 16 = bf16 sublane packing
    return n_tiles, tb


# ---------------------------------------------------------------------------
# Forward
# ---------------------------------------------------------------------------
def qnetwork_forward(state, action, prepared):
    """state: (B, state_dim) f32, action: (B, action_dim) f32 -> (B, 1) f32."""
    w1_s, w1_a, b1, w2c, b2, w3t, b3 = prepared
    state = jnp.asarray(state, jnp.float32)
    action = jnp.asarray(action, jnp.float32)
    B, sd = state.shape
    _, ad = action.shape

    n_tiles, tb = _choose_tiling(B)
    b_pad = n_tiles * tb
    if b_pad != B:   # pad rows compute relu(bias) garbage, sliced off below
        state = jnp.pad(state, ((0, b_pad - B), (0, 0)))
        action = jnp.pad(action, ((0, b_pad - B), (0, 0)))

    def batch_spec(cols):
        return pl.BlockSpec((tb, cols), lambda i: (i, 0))

    def resident(arr):
        # Same block every grid step -> DMA'd once, stays VMEM-resident.
        return pl.BlockSpec(arr.shape, lambda i: (0,) * arr.ndim)

    w_bytes = sum(int(a.size) * a.dtype.itemsize
                  for a in (w1_s, w1_a, b1, w2c, b2, w3t, b3))
    cost = pl.CostEstimate(
        flops=2 * b_pad * ((sd + ad) * 256 + 256 * 128 + 128 * 1),
        transcendentals=0,
        bytes_accessed=b_pad * (sd + ad) * 4 + w_bytes + b_pad * 4,
    )

    out = pl.pallas_call(
        qnetwork_kernel,
        out_shape=jax.ShapeDtypeStruct((n_tiles, 1, tb), jnp.float32),
        grid=(n_tiles,),
        in_specs=[
            batch_spec(sd), batch_spec(ad),
            resident(w1_s), resident(w1_a), resident(b1),
            resident(w2c), resident(b2),
            resident(w3t), resident(b3),
        ],
        out_specs=pl.BlockSpec((1, 1, tb), lambda i: (i, 0, 0)),
        compiler_params=pltpu.CompilerParams(
            # Batch tiles are independent -> shard across v7x's 2 TensorCores;
            # harmless on single-TC v5e/v6e.
            dimension_semantics=("parallel",)),
        cost_estimate=cost,
    )(state, action, w1_s, w1_a, b1, w2c, b2, w3t, b3)

    return out.reshape(b_pad, 1)[:B]


# ---------------------------------------------------------------------------
# Init + reference
# ---------------------------------------------------------------------------
def init_params(key, state_dim, action_dim):
    """torch.nn.Linear-style init: U(-1/sqrt(fan_in), 1/sqrt(fan_in))."""
    dims = [(state_dim + action_dim, 256), (256, 128), (128, 1)]
    params = []
    for fan_in, fan_out in dims:
        key, kw, kb = jax.random.split(key, 3)
        bound = 1.0 / jnp.sqrt(jnp.float32(fan_in))
        w = jax.random.uniform(kw, (fan_in, fan_out), jnp.float32, -bound, bound)
        b = jax.random.uniform(kb, (1, fan_out), jnp.float32, -bound, bound)
        params.extend([w, b])
    return tuple(params)


def reference_forward(state, action, params):
    w1, b1, w2, b2, w3, b3 = params
    x = jnp.concatenate([state, action], axis=1)
    h1 = jnp.maximum(x @ w1 + b1, 0.0)
    h2 = jnp.maximum(h1 @ w2 + b2, 0.0)
    return h2 @ w3 + b3


if __name__ == "__main__":
    key = jax.random.PRNGKey(0)
    batch, state_dim, action_dim = 8, 16, 4

    k_params, k_state, k_action = jax.random.split(key, 3)
    params = init_params(k_params, state_dim, action_dim)
    state = jax.random.normal(k_state, (batch, state_dim), jnp.float32)
    action = jax.random.normal(k_action, (batch, action_dim), jnp.float32)

    prepared = prepare_params(params, state_dim)          # one-time weight prep
    q = qnetwork_forward(state, action, prepared)
    q = jax.block_until_ready(q)

    q_ref = reference_forward(state, action, params)
    assert q.shape == (batch, 1), q.shape
    # Layer 1 is full f32; layers 2/3 use bf16 weights with f32 accumulation.
    assert jnp.allclose(q, q_ref, atol=5e-2, rtol=5e-2), (q, q_ref)

    print("KERNEL_OK")
</pallas_src>

<mosaic_0001>
module attributes {stable_mosaic.version = 11 : i64} {
  func.func @qnetwork_kernel(%arg0: i32, %arg1: memref<16x16xf32, #tpu.memory_space<vmem>>, %arg2: memref<16x4xf32, #tpu.memory_space<vmem>>, %arg3: memref<16x256xf32, #tpu.memory_space<vmem>>, %arg4: memref<4x256xf32, #tpu.memory_space<vmem>>, %arg5: memref<1x256xf32, #tpu.memory_space<vmem>>, %arg6: memref<256x128xbf16, #tpu.memory_space<vmem>>, %arg7: memref<1x128xf32, #tpu.memory_space<vmem>>, %arg8: memref<1x128xbf16, #tpu.memory_space<vmem>>, %arg9: memref<1x1xf32, #tpu.memory_space<vmem>>, %arg10: memref<1x1x16xf32, #tpu.memory_space<vmem>>) attributes {dimension_semantics = [#tpu.dimension_semantics<parallel>], iteration_bounds = array<i64: 1>, scalar_prefetch = 0 : i64, scratch_operands = 0 : i64, tpu.core_type = #tpu.core_type<tc>, window_params = [{transform_indices = @transform_0, window_bounds = array<i64: 16, 16>}, {transform_indices = @transform_1, window_bounds = array<i64: 16, 4>}, {pipeline_mode = #tpu.pipeline_mode<synchronous>, transform_indices = @transform_2, window_bounds = array<i64: 16, 256>}, {pipeline_mode = #tpu.pipeline_mode<synchronous>, transform_indices = @transform_3, window_bounds = array<i64: 4, 256>}, {pipeline_mode = #tpu.pipeline_mode<synchronous>, transform_indices = @transform_4, window_bounds = array<i64: 1, 256>}, {pipeline_mode = #tpu.pipeline_mode<synchronous>, transform_indices = @transform_5, window_bounds = array<i64: 256, 128>}, {pipeline_mode = #tpu.pipeline_mode<synchronous>, transform_indices = @transform_6, window_bounds = array<i64: 1, 128>}, {pipeline_mode = #tpu.pipeline_mode<synchronous>, transform_indices = @transform_7, window_bounds = array<i64: 1, 128>}, {pipeline_mode = #tpu.pipeline_mode<synchronous>, transform_indices = @transform_8, window_bounds = array<i64: 1, 1>}, {transform_indices = @transform_9, window_bounds = array<i64: 1, 1, 16>}]} {
    %c0 = arith.constant 0 : index
    %c0_0 = arith.constant 0 : index
    %0 = vector.load %arg1[%c0, %c0_0] : memref<16x16xf32, #tpu.memory_space<vmem>>, vector<16x16xf32>
    %c0_1 = arith.constant 0 : index
    %c0_2 = arith.constant 0 : index
    %1 = vector.load %arg3[%c0_1, %c0_2] : memref<16x256xf32, #tpu.memory_space<vmem>>, vector<16x256xf32>
    %cst = arith.constant dense<0.000000e+00> : vector<16x256xf32>
    %2 = tpu.matmul %0, %1, %cst {dimension_numbers = #tpu.dot_dimension_numbers<[1], [0], [0], [1], [0, 0, 1, 1], [], []>} : vector<16x16xf32>, vector<16x256xf32>, vector<16x256xf32> -> vector<16x256xf32>
    %c0_3 = arith.constant 0 : index
    %c0_4 = arith.constant 0 : index
    %3 = vector.load %arg2[%c0_3, %c0_4] : memref<16x4xf32, #tpu.memory_space<vmem>>, vector<16x4xf32>
    %c0_5 = arith.constant 0 : index
    %c0_6 = arith.constant 0 : index
    %4 = vector.load %arg4[%c0_5, %c0_6] : memref<4x256xf32, #tpu.memory_space<vmem>>, vector<4x256xf32>
    %cst_7 = arith.constant dense<0.000000e+00> : vector<16x256xf32>
    %5 = tpu.matmul %3, %4, %cst_7 {dimension_numbers = #tpu.dot_dimension_numbers<[1], [0], [0], [1], [0, 0, 1, 1], [], []>} : vector<16x4xf32>, vector<4x256xf32>, vector<16x256xf32> -> vector<16x256xf32>
    %6 = arith.addf %2, %5 : vector<16x256xf32>
    %c0_8 = arith.constant 0 : index
    %c0_9 = arith.constant 0 : index
    %7 = vector.load %arg5[%c0_8, %c0_9] : memref<1x256xf32, #tpu.memory_space<vmem>>, vector<1x256xf32>
    %8 = vector.broadcast %7 : vector<1x256xf32> to vector<16x256xf32>
    %9 = arith.addf %6, %8 : vector<16x256xf32>
    %cst_10 = arith.constant 0.000000e+00 : f32
    %10 = vector.broadcast %cst_10 : f32 to vector<16x256xf32>
    %11 = arith.maximumf %9, %10 : vector<16x256xf32>
    %12 = arith.truncf %11 : vector<16x256xf32> to vector<16x256xbf16>
    %c0_11 = arith.constant 0 : index
    %c0_12 = arith.constant 0 : index
    %13 = vector.load %arg6[%c0_11, %c0_12] : memref<256x128xbf16, #tpu.memory_space<vmem>>, vector<256x128xbf16>
    %cst_13 = arith.constant dense<0.000000e+00> : vector<16x128xf32>
    %14 = tpu.matmul %12, %13, %cst_13 {dimension_numbers = #tpu.dot_dimension_numbers<[1], [0], [0], [1], [0, 0, 1, 1], [], []>} : vector<16x256xbf16>, vector<256x128xbf16>, vector<16x128xf32> -> vector<16x128xf32>
    %c0_14 = arith.constant 0 : index
    %c0_15 = arith.constant 0 : index
    %15 = vector.load %arg7[%c0_14, %c0_15] : memref<1x128xf32, #tpu.memory_space<vmem>>, vector<1x128xf32>
    %16 = vector.broadcast %15 : vector<1x128xf32> to vector<16x128xf32>
    %17 = arith.addf %14, %16 : vector<16x128xf32>
    %cst_16 = arith.constant 0.000000e+00 : f32
    %18 = vector.broadcast %cst_16 : f32 to vector<16x128xf32>
    %19 = arith.maximumf %17, %18 : vector<16x128xf32>
    %c0_17 = arith.constant 0 : index
    %c0_18 = arith.constant 0 : index
    %20 = vector.load %arg8[%c0_17, %c0_18] : memref<1x128xbf16, #tpu.memory_space<vmem>>, vector<1x128xbf16>
    %21 = arith.truncf %19 : vector<16x128xf32> to vector<16x128xbf16>
    %cst_19 = arith.constant dense<0.000000e+00> : vector<1x16xf32>
    %22 = tpu.matmul %20, %21, %cst_19 {dimension_numbers = #tpu.dot_dimension_numbers<[1], [1], [0], [0], [0, 0, 1, 0], [], []>} : vector<1x128xbf16>, vector<16x128xbf16>, vector<1x16xf32> -> vector<1x16xf32>
    %c0_20 = arith.constant 0 : index
    %c0_21 = arith.constant 0 : index
    %23 = vector.load %arg9[%c0_20, %c0_21] : memref<1x1xf32, #tpu.memory_space<vmem>>, vector<1x1xf32>
    %24 = vector.broadcast %23 : vector<1x1xf32> to vector<1x16xf32>
    %25 = arith.addf %22, %24 : vector<1x16xf32>
    %c0_22 = arith.constant 0 : index
    %c0_23 = arith.constant 0 : index
    %c0_24 = arith.constant 0 : index
    %26 = vector.load %arg10[%c0_22, %c0_23, %c0_24] : memref<1x1x16xf32, #tpu.memory_space<vmem>>, vector<1x1x16xf32>
    %27 = vector.shape_cast %26 : vector<1x1x16xf32> to vector<1x16xf32>
    %28 = vector.shape_cast %25 : vector<1x16xf32> to vector<1x1x16xf32>
    tpu.vector_store %arg10[%c0_22, %c0_23, %c0_24], %28 {strides = array<i32>} : memref<1x1x16xf32, #tpu.memory_space<vmem>>, vector<1x1x16xf32>,
    return
  }
  func.func @transform_0(%arg0: i32) -> (i32, i32) {
    %c0_i32 = arith.constant 0 : i32
    %c0_i32_0 = arith.constant 0 : i32
    return %arg0, %c0_i32 : i32, i32
  }
  func.func @transform_1(%arg0: i32) -> (i32, i32) {
    %c0_i32 = arith.constant 0 : i32
    %c0_i32_0 = arith.constant 0 : i32
    return %arg0, %c0_i32 : i32, i32
  }
  func.func @transform_2(%arg0: i32) -> (i32, i32) {
    %c0_i32 = arith.constant 0 : i32
    %c0_i32_0 = arith.constant 0 : i32
    %c0_i32_1 = arith.constant 0 : i32
    return %c0_i32, %c0_i32_0 : i32, i32
  }
  func.func @transform_3(%arg0: i32) -> (i32, i32) {
    %c0_i32 = arith.constant 0 : i32
    %c0_i32_0 = arith.constant 0 : i32
    %c0_i32_1 = arith.constant 0 : i32
    return %c0_i32, %c0_i32_0 : i32, i32
  }
  func.func @transform_4(%arg0: i32) -> (i32, i32) {
    %c0_i32 = arith.constant 0 : i32
    %c0_i32_0 = arith.constant 0 : i32
    %c0_i32_1 = arith.constant 0 : i32
    return %c0_i32, %c0_i32_0 : i32, i32
  }
  func.func @transform_5(%arg0: i32) -> (i32, i32) {
    %c0_i32 = arith.constant 0 : i32
    %c0_i32_0 = arith.constant 0 : i32
    %c0_i32_1 = arith.constant 0 : i32
    return %c0_i32, %c0_i32_0 : i32, i32
  }
  func.func @transform_6(%arg0: i32) -> (i32, i32) {
    %c0_i32 = arith.constant 0 : i32
    %c0_i32_0 = arith.constant 0 : i32
    %c0_i32_1 = arith.constant 0 : i32
    return %c0_i32, %c0_i32_0 : i32, i32
  }
  func.func @transform_7(%arg0: i32) -> (i32, i32) {
    %c0_i32 = arith.constant 0 : i32
    %c0_i32_0 = arith.constant 0 : i32
    %c0_i32_1 = arith.constant 0 : i32
    return %c0_i32, %c0_i32_0 : i32, i32
  }
  func.func @transform_8(%arg0: i32) -> (i32, i32) {
    %c0_i32 = arith.constant 0 : i32
    %c0_i32_0 = arith.constant 0 : i32
    %c0_i32_1 = arith.constant 0 : i32
    return %c0_i32, %c0_i32_0 : i32, i32
  }
  func.func @transform_9(%arg0: i32) -> (i32, i32, i32) {
    %c0_i32 = arith.constant 0 : i32
    %c0_i32_0 = arith.constant 0 : i32
    %c0_i32_1 = arith.constant 0 : i32
    return %arg0, %c0_i32, %c0_i32_0 : i32, i32, i32
  }
}

</mosaic_0001>

<llo_original>
// kernel: tpu_custom_call.1
$region0: #{tpu_custom_call.1}
  #allocation0 [shape = 'u32[]', space=smem, size = 0x4, offset = 0x4, fixed_abs, tag = 'smem constant byte address 0x4 - core index']
  #allocation1 [shape = 'u32[144,128]{1,0:T(1,128)}', space=vmem, size = 0x12000, scoped, tag = 'internal scratch']
  #allocation2 [shape = 'f32[1,1]{1,0:T(1,128)S(1)}', space=vmem, size = 0x200, scoped, tag = 'scoped memory for tpu_custom_call.1']
  %s0 = inlined_call_operand.vmem [shape: f32[16,16], index: 0, kind: input, shape index: {}]
  %s1 = inlined_call_operand.vmem [shape: f32[16,4], index: 1, kind: input, shape index: {}]
  %s2 = inlined_call_operand.hbm [shape: f32[16,256], index: 2, kind: input, shape index: {}]
  %s3 = inlined_call_operand.vmem [shape: f32[4,256], index: 3, kind: input, shape index: {}]
  %s4 = inlined_call_operand.vmem [shape: f32[1,256], index: 4, kind: input, shape index: {}]
  %s5 = inlined_call_operand.hbm [shape: bf16[256,128], index: 5, kind: input, shape index: {}]
  %s6 = inlined_call_operand.vmem [shape: f32[1,128], index: 6, kind: input, shape index: {}]
  %s7 = inlined_call_operand.vmem [shape: bf16[1,128], index: 7, kind: input, shape index: {}]
  %s8 = inlined_call_operand.<no memory space> [shape: f32[1,1], index: 8, kind: input, shape index: {}]
  %s9 = inlined_call_operand.hbm [shape: f32[1,1,16], index: 9, kind: output, shape index: {}]
  %s10 = sld [smem:[#allocation0]]
  $region54: #{tpu_custom_call.1} parent=0
    _
  %s12 = ssub.s32 1, %s10
  %s13 = scalar_select 0, %s12, %s10
  %v14 = vstv %s8
  %15 = vst [vmem:[#allocation2] sm:$0x1] %v14
  $region1: #{tpu_custom_call.1} parent=0
    #allocation3 [shape = 'u8[16384]{0}', space=vmem, size = 0x4000, scoped, tag = 'input window, operand 2, single buffered']
    #allocation4 [shape = 's32[1]{0}', space=sflag, size = 0x4, scoped, tag = 'scoped memory for tpu_custom_call.1']
    #allocation5 [shape = 's32[1]{0}', space=sflag, size = 0x4, scoped, tag = 'scoped memory for tpu_custom_call.1']
    #allocation6 [shape = 'u8[65536]{0}', space=vmem, size = 0x10000, scoped, tag = 'input window, operand 5, single buffered']
    #allocation7 [shape = 's32[1]{0}', space=sflag, size = 0x4, scoped, tag = 'scoped memory for tpu_custom_call.1']
    #allocation8 [shape = 'u8[512]{0}', space=vmem, size = 0x400, scoped, tag = 'output window, operand 0, single buffered']
    %16 = vsyncpa [#allocation4], 0
    %17 = vsyncpa [#allocation7], 0
    %18 = vsyncpa [#allocation5], 0
    // Predicated region
    $region2: #{tpu_custom_call.1} parent=1 // pred_check
      _
    $region3: #{tpu_custom_call.1} parent=1 // pred_check_branch
      %20 = sbr.rel (0) target = $region5
    $region4: #{tpu_custom_call.1} parent=1 // pred_region
      _
    $region5: #{tpu_custom_call.1} parent=1 // pred_fallthru
      _
    // Predicated region
    $region6: #{tpu_custom_call.1} parent=1 // pred_check
      _
    $region7: #{tpu_custom_call.1} parent=1 // pred_check_branch
      %22 = sbr.rel (0) target = $region9
    $region8: #{tpu_custom_call.1} parent=1 // pred_region
      _
    $region9: #{tpu_custom_call.1} parent=1 // pred_fallthru
      _
    // Predicated region
    $region10: #{tpu_custom_call.1} parent=1 // pred_check
      _
    $region11: #{tpu_custom_call.1} parent=1 // pred_check_branch
      %24 = sbr.rel (0) target = $region13
    $region12: #{tpu_custom_call.1} parent=1 // pred_region
      %s26 = ssub.s32 512, 512
      %27 = vsyncadd [#allocation4], %s26
      %s28 = sshll.u32 [#allocation3], 4
      %s29 = int_to_ptr.vmem [resolvable:$true] %s28
      %34 = dma.hbm_to_vmem [thread:$0]  %s2, 512, %s29, [#allocation4], 256, 256, 16
    $region13: #{tpu_custom_call.1} parent=1 // pred_fallthru
      _
    // Predicated region
    $region14: #{tpu_custom_call.1} parent=1 // pred_check
      _
    $region15: #{tpu_custom_call.1} parent=1 // pred_check_branch
      %36 = sbr.rel (0) target = $region17
    $region16: #{tpu_custom_call.1} parent=1 // pred_region
      _
    $region17: #{tpu_custom_call.1} parent=1 // pred_fallthru
      _
    // Predicated region
    $region18: #{tpu_custom_call.1} parent=1 // pred_check
      _
    $region19: #{tpu_custom_call.1} parent=1 // pred_check_branch
      %38 = sbr.rel (0) target = $region21
    $region20: #{tpu_custom_call.1} parent=1 // pred_region
      _
    $region21: #{tpu_custom_call.1} parent=1 // pred_fallthru
      _
    // Predicated region
    $region22: #{tpu_custom_call.1} parent=1 // pred_check
      _
    $region23: #{tpu_custom_call.1} parent=1 // pred_check_branch
      %40 = sbr.rel (0) target = $region25
    $region24: #{tpu_custom_call.1} parent=1 // pred_region
      %s42 = ssub.s32 2048, 2048
      %43 = vsyncadd [#allocation7], %s42
      %s44 = sshll.u32 [#allocation6], 4
      %s45 = int_to_ptr.vmem [resolvable:$true] %s44
      %50 = dma.hbm_to_vmem [thread:$0]  %s5, 2048, %s45, [#allocation7], 64, 64, 4
    $region25: #{tpu_custom_call.1} parent=1 // pred_fallthru
      _
    // Predicated region
    $region26: #{tpu_custom_call.1} parent=1 // pred_check
      _
    $region27: #{tpu_custom_call.1} parent=1 // pred_check_branch
      %52 = sbr.rel (0) target = $region29
    $region28: #{tpu_custom_call.1} parent=1 // pred_region
      _
    $region29: #{tpu_custom_call.1} parent=1 // pred_fallthru
      _
    // Predicated region
    $region30: #{tpu_custom_call.1} parent=1 // pred_check
      _
    $region31: #{tpu_custom_call.1} parent=1 // pred_check_branch
      %54 = sbr.rel (0) target = $region33
    $region32: #{tpu_custom_call.1} parent=1 // pred_region
      _
    $region33: #{tpu_custom_call.1} parent=1 // pred_fallthru
      _
    // Predicated region
    $region34: #{tpu_custom_call.1} parent=1 // pred_check
      _
    $region35: #{tpu_custom_call.1} parent=1 // pred_check_branch
      %56 = sbr.rel (0) target = $region37
    $region36: #{tpu_custom_call.1} parent=1 // pred_region
      _
    $region37: #{tpu_custom_call.1} parent=1 // pred_fallthru
      _
    // Predicated region
    $region38: #{tpu_custom_call.1} parent=1 // pred_check
      _
    $region39: #{tpu_custom_call.1} parent=1 // pred_check_branch
      %58 = sbr.rel (0) target = $region41
    $region40: #{tpu_custom_call.1} parent=1 // pred_region
      %59 = dma.done [#allocation4], 512
    $region41: #{tpu_custom_call.1} parent=1 // pred_fallthru
      _
    // Predicated region
    $region42: #{tpu_custom_call.1} parent=1 // pred_check
      _
    $region43: #{tpu_custom_call.1} parent=1 // pred_check_branch
      %61 = sbr.rel (0) target = $region45
    $region44: #{tpu_custom_call.1} parent=1 // pred_region
      %62 = dma.done [#allocation7], 2048
    $region45: #{tpu_custom_call.1} parent=1 // pred_fallthru
      _
    %v64 = vld [vmem:[%s0] sm:$0xff]
    %v65 = vld [vmem:[%s0 + $0x8] sm:$0xff]
    %v66 = vld [vmem:[#allocation3] sm:$0xff]
    %v67 = vld [vmem:[#allocation3 + $0x8] sm:$0xff]
    %v68 = vld [vmem:[#allocation3 + $0x10] sm:$0xff]
    %v69 = vld [vmem:[#allocation3 + $0x18] sm:$0xff]
    %v70 = vld [vmem:[%s1] sm:$0xff]
    %v71 = vld [vmem:[%s1 + $0x8] sm:$0xff]
    %v72 = vld [vmem:[%s3] sm:$0xff]
    %v74 = vcombine.high %v72, %v72
    %vm75 = vcmask 31744
    %v77 = vsel %vm75, %v70, 0
    %v80 = vsel %vm75, %v71, 0
    %vm82 = vcmask 1043456
    %v83 = vsel %vm82, %v72, 0
    %v85 = vsel %vm82, %v74, 0
    %87 = vmatprep.subr.mxu0 %v85
    %88 = vmatpush1.msra.mxu0 %v83
    %89 = vmatprep.subr.mxu0 0.0
    %90 = vmatpush1.msra.mxu0 0.0
    %91 = vmatprep.subr.mxu0 0.0
    %92 = vmatpush1.msra.mxu0 0.0
    %93 = vmatprep.subr.mxu0 0.0
    %94 = vmatpush1.msra.mxu0 0.0
    %95 = vmatprep.subr.mxu0 0.0
    %96 = vmatpush1.msra.mxu0 0.0
    %97 = vmatprep.subr.mxu0 0.0
    %98 = vmatpush1.msra.mxu0 0.0
    %99 = vmatprep.subr.mxu0 0.0
    %100 = vmatpush1.msra.mxu0 0.0
    %101 = vmatprep.subr.mxu0 0.0
    %102 = vmatpush1.msra.mxu0 0.0
    %103 = vmatprep.subr.mxu0 0.0
    %104 = vmatpush1.msra.mxu0 0.0
    %105 = vmatprep.subr.mxu0 0.0
    %106 = vmatpush1.msra.mxu0 0.0
    %107 = vmatprep.subr.mxu0 0.0
    %108 = vmatpush1.msra.mxu0 0.0
    %109 = vmatprep.subr.mxu0 0.0
    %110 = vmatpush1.msra.mxu0 0.0
    %111 = vmatprep.subr.mxu0 0.0
    %112 = vmatpush1.msra.mxu0 0.0
    %113 = vmatprep.subr.mxu0 0.0
    %114 = vmatpush1.msra.mxu0 0.0
    %115 = vmatprep.subr.mxu0 0.0
    %116 = vmatpush1.msra.mxu0 0.0
    %117 = vmatprep.subr.mxu0 0.0
    %118 = vmatpush1.msra.mxu0 0.0
    %119 = vmatprep.subr.mxu0 0.0
    %120 = vmatpush1.msra.mxu0 0.0
    %121 = vmatprep.subr.mxu0 0.0
    %122 = vmatpush1.msra.mxu0 0.0
    %123 = vmatprep.subr.mxu0 0.0
    %124 = vmatpush1.msra.mxu0 0.0
    %125 = vmatprep.subr.mxu0 0.0
    %126 = vmatpush1.msra.mxu0 0.0
    %127 = vmatprep.subr.mxu0 0.0
    %128 = vmatpush1.msra.mxu0 0.0
    %129 = vmatprep.subr.mxu0 0.0
    %130 = vmatpush1.msra.mxu0 0.0
    %131 = vmatprep.subr.mxu0 0.0
    %132 = vmatpush1.msra.mxu0 0.0
    %133 = vmatprep.subr.mxu0 0.0
    %134 = vmatpush1.msra.mxu0 0.0
    %135 = vmatprep.subr.mxu0 0.0
    %136 = vmatpush1.msra.mxu0 0.0
    %137 = vmatprep.subr.mxu0 0.0
    %138 = vmatpush1.msra.mxu0 0.0
    %139 = vmatprep.subr.mxu0 0.0
    %140 = vmatpush1.msra.mxu0 0.0
    %141 = vmatprep.subr.mxu0 0.0
    %142 = vmatpush1.msra.mxu0 0.0
    %143 = vmatprep.subr.mxu0 0.0
    %144 = vmatpush1.msra.mxu0 0.0
    %145 = vmatprep.subr.mxu0 0.0
    %146 = vmatpush1.msra.mxu0 0.0
    %147 = vmatprep.subr.mxu0 0.0
    %148 = vmatpush1.msra.mxu0 0.0
    %149 = vmatprep.subr.mxu0 0.0
    %150 = vmatpush1.msra.mxu0 0.0
    %151 = vmatprep.mubr.f32.mxu0 0.0
    %152 = vmatmul.mubr.f32.gmra.mrb[0].mxu0 %v77
    %v153 = vpop.f32.mrb[0].mxu0
    %v154 = vadd.f32 0.0, %v153
    %v155 = vpop.f32.mrb[0].mxu0
    %v156 = vadd.f32 0.0, %v155
    %157 = vmatprep.mubr.f32.mxu0 0.0
    %158 = vmatmul.mubr.f32.gmra.mrb[0].mxu0 %v80
    %v159 = vpop.f32.mrb[0].mxu0
    %v160 = vadd.f32 0.0, %v159
    %v161 = vpop.f32.mrb[0].mxu0
    %v162 = vadd.f32 0.0, %v161
    %163 = vdwg.mxu0
    %vm164 = vcmask 130048
    %v166 = vsel %vm164, %v64, 0
    %v169 = vsel %vm164, %v65, 0
    %171 = vmatprep.subr.mxu0 %v67
    %172 = vmatpush1.msra.mxu0 %v66
    %173 = vmatprep.subr.mxu0 %v69
    %174 = vmatpush1.msra.mxu0 %v68
    %175 = vmatprep.subr.mxu0 0.0
    %176 = vmatpush1.msra.mxu0 0.0
    %177 = vmatprep.subr.mxu0 0.0
    %178 = vmatpush1.msra.mxu0 0.0
    %179 = vmatprep.subr.mxu0 0.0
    %180 = vmatpush1.msra.mxu0 0.0
    %181 = vmatprep.subr.mxu0 0.0
    %182 = vmatpush1.msra.mxu0 0.0
    %183 = vmatprep.subr.mxu0 0.0
    %184 = vmatpush1.msra.mxu0 0.0
    %185 = vmatprep.subr.mxu0 0.0
    %186 = vmatpush1.msra.mxu0 0.0
    %187 = vmatprep.subr.mxu0 0.0
    %188 = vmatpush1.msra.mxu0 0.0
    %189 = vmatprep.subr.mxu0 0.0
    %190 = vmatpush1.msra.mxu0 0.0
    %191 = vmatprep.subr.mxu0 0.0
    %192 = vmatpush1.msra.mxu0 0.0
    %193 = vmatprep.subr.mxu0 0.0
    %194 = vmatpush1.msra.mxu0 0.0
    %195 = vmatprep.subr.mxu0 0.0
    %196 = vmatpush1.msra.mxu0 0.0
    %197 = vmatprep.subr.mxu0 0.0
    %198 = vmatpush1.msra.mxu0 0.0
    %199 = vmatprep.subr.mxu0 0.0
    %200 = vmatpush1.msra.mxu0 0.0
    %201 = vmatprep.subr.mxu0 0.0
    %202 = vmatpush1.msra.mxu0 0.0
    %203 = vmatprep.subr.mxu0 0.0
    %204 = vmatpush1.msra.mxu0 0.0
    %205 = vmatprep.subr.mxu0 0.0
    %206 = vmatpush1.msra.mxu0 0.0
    %207 = vmatprep.subr.mxu0 0.0
    %208 = vmatpush1.msra.mxu0 0.0
    %209 = vmatprep.subr.mxu0 0.0
    %210 = vmatpush1.msra.mxu0 0.0
    %211 = vmatprep.subr.mxu0 0.0
    %212 = vmatpush1.msra.mxu0 0.0
    %213 = vmatprep.subr.mxu0 0.0
    %214 = vmatpush1.msra.mxu0 0.0
    %215 = vmatprep.subr.mxu0 0.0
    %216 = vmatpush1.msra.mxu0 0.0
    %217 = vmatprep.subr.mxu0 0.0
    %218 = vmatpush1.msra.mxu0 0.0
    %219 = vmatprep.subr.mxu0 0.0
    %220 = vmatpush1.msra.mxu0 0.0
    %221 = vmatprep.subr.mxu0 0.0
    %222 = vmatpush1.msra.mxu0 0.0
    %223 = vmatprep.subr.mxu0 0.0
    %224 = vmatpush1.msra.mxu0 0.0
    %225 = vmatprep.subr.mxu0 0.0
    %226 = vmatpush1.msra.mxu0 0.0
    %227 = vmatprep.subr.mxu0 0.0
    %228 = vmatpush1.msra.mxu0 0.0
    %229 = vmatprep.subr.mxu0 0.0
    %230 = vmatpush1.msra.mxu0 0.0
    %231 = vmatprep.subr.mxu0 0.0
    %232 = vmatpush1.msra.mxu0 0.0
    %233 = vmatprep.subr.mxu0 0.0
    %234 = vmatpush1.msra.mxu0 0.0
    %235 = vmatprep.mubr.f32.mxu0 0.0
    %236 = vmatmul.mubr.f32.gmra.mrb[0].mxu0 %v166
    %v237 = vpop.f32.mrb[0].mxu0
    %v238 = vadd.f32 %v154, %v237
    %v239 = vpop.f32.mrb[0].mxu0
    %v240 = vadd.f32 %v156, %v239
    %241 = vmatprep.mubr.f32.mxu0 0.0
    %242 = vmatmul.mubr.f32.gmra.mrb[0].mxu0 %v169
    %v243 = vpop.f32.mrb[0].mxu0
    %v244 = vadd.f32 %v160, %v243
    %v245 = vpop.f32.mrb[0].mxu0
    %v246 = vadd.f32 %v162, %v245
    %247 = vdwg.mxu0
    %v248 = vld [vmem:[%s4] sm:$0x3]
    %v250 = vlaneseq
    %v251 = vshrl.u32 %v250, 7
    %v252 = vsub.s32 0, %v251
    %v253 = vrot.slane %v248, %v252
    %v254 = vlaneseq
    %v255 = vshrl.u32 %v254, 7
    %v256 = vsub.s32 1, %v255
    %v257 = vrot.slane %v248, %v256
    %v260 = vadd.f32 %v238, %v253
    %v261 = vadd.f32 %v240, %v257
    %v262 = vadd.f32 %v244, %v253
    %v263 = vadd.f32 %v246, %v257
    %v264 = vmax.f32 %v260, 0.0
    %v265 = vmax.f32 %v261, 0.0
    %v266 = vmax.f32 %v262, 0.0
    %v267 = vmax.f32 %v263, 0.0
    %v268 = vpack.c.bf16 %v266, %v264
    %v269 = vpack.c.bf16 %v267, %v265
    %v270 = vld [vmem:[#allocation6] sm:$0xf]
    %v271 = vld [vmem:[#allocation6 + $0x4] sm:$0xf]
    %v272 = vld [vmem:[#allocation6 + $0x8] sm:$0xf]
    %v273 = vld [vmem:[#allocation6 + $0xc] sm:$0xf]
    %v274 = vld [vmem:[#allocation6 + $0x10] sm:$0xf]
    %v275 = vld [vmem:[#allocation6 + $0x14] sm:$0xf]
    %v276 = vld [vmem:[#allocation6 + $0x18] sm:$0xf]
    %v277 = vld [vmem:[#allocation6 + $0x1c] sm:$0xf]
    %v278 = vld [vmem:[#allocation6 + $0x20] sm:$0xf]
    %v279 = vld [vmem:[#allocation6 + $0x24] sm:$0xf]
    %v280 = vld [vmem:[#allocation6 + $0x28] sm:$0xf]
    %v281 = vld [vmem:[#allocation6 + $0x2c] sm:$0xf]
    %v282 = vld [vmem:[#allocation6 + $0x30] sm:$0xf]
    %v283 = vld [vmem:[#allocation6 + $0x34] sm:$0xf]
    %v284 = vld [vmem:[#allocation6 + $0x38] sm:$0xf]
    %v285 = vld [vmem:[#allocation6 + $0x3c] sm:$0xf]
    %v286 = vld [vmem:[#allocation6 + $0x40] sm:$0xf]
    %v287 = vld [vmem:[#allocation6 + $0x44] sm:$0xf]
    %v288 = vld [vmem:[#allocation6 + $0x48] sm:$0xf]
    %v289 = vld [vmem:[#allocation6 + $0x4c] sm:$0xf]
    %v290 = vld [vmem:[#allocation6 + $0x50] sm:$0xf]
    %v291 = vld [vmem:[#allocation6 + $0x54] sm:$0xf]
    %v292 = vld [vmem:[#allocation6 + $0x58] sm:$0xf]
    %v293 = vld [vmem:[#allocation6 + $0x5c] sm:$0xf]
    %v294 = vld [vmem:[#allocation6 + $0x60] sm:$0xf]
    %v295 = vld [vmem:[#allocation6 + $0x64] sm:$0xf]
    %v296 = vld [vmem:[#allocation6 + $0x68] sm:$0xf]
    %v297 = vld [vmem:[#allocation6 + $0x6c] sm:$0xf]
    %v298 = vld [vmem:[#allocation6 + $0x70] sm:$0xf]
    %v299 = vld [vmem:[#allocation6 + $0x74] sm:$0xf]
    %v300 = vld [vmem:[#allocation6 + $0x78] sm:$0xf]
    %v301 = vld [vmem:[#allocation6 + $0x7c] sm:$0xf]
    %v302 = vld [vmem:[%s6] sm:$0x1]
    %v304 = vlaneseq
    %v305 = vshrl.u32 %v304, 7
    %v306 = vsub.s32 0, %v305
    %v307 = vrot.slane %v302, %v306
    %v341 = vunpack.c.l.b16 %v270
    %v342 = vunpack.c.l.b16 %v271
    %v343 = vunpack.c.l.b16 %v272
    %v344 = vunpack.c.l.b16 %v273
    %v345 = vunpack.c.l.b16 %v274
    %v346 = vunpack.c.l.b16 %v275
    %v347 = vunpack.c.l.b16 %v276
    %v348 = vunpack.c.l.b16 %v277
    %v349 = vunpack.c.l.b16 %v278
    %v350 = vunpack.c.l.b16 %v279
    %v351 = vunpack.c.l.b16 %v280
    %v352 = vunpack.c.l.b16 %v281
    %v353 = vunpack.c.l.b16 %v282
    %v354 = vunpack.c.l.b16 %v283
    %v355 = vunpack.c.l.b16 %v284
    %v356 = vunpack.c.l.b16 %v285
    %v357 = vunpack.c.l.b16 %v286
    %v358 = vunpack.c.l.b16 %v287
    %v359 = vunpack.c.l.b16 %v288
    %v360 = vunpack.c.l.b16 %v289
    %v361 = vunpack.c.l.b16 %v290
    %v362 = vunpack.c.l.b16 %v291
    %v363 = vunpack.c.l.b16 %v292
    %v364 = vunpack.c.l.b16 %v293
    %v365 = vunpack.c.l.b16 %v294
    %v366 = vunpack.c.l.b16 %v295
    %v367 = vunpack.c.l.b16 %v296
    %v368 = vunpack.c.l.b16 %v297
    %v369 = vunpack.c.l.b16 %v298
    %v370 = vunpack.c.l.b16 %v299
    %v371 = vunpack.c.l.b16 %v300
    %v372 = vunpack.c.l.b16 %v301
    %v373 = vpack.c.b16 %v342, %v341
    %v374 = vpack.c.b16 %v344, %v343
    %v375 = vpack.c.b16 %v346, %v345
    %v376 = vpack.c.b16 %v348, %v347
    %v377 = vpack.c.b16 %v350, %v349
    %v378 = vpack.c.b16 %v352, %v351
    %v379 = vpack.c.b16 %v354, %v353
    %v380 = vpack.c.b16 %v356, %v355
    %v381 = vpack.c.b16 %v358, %v357
    %v382 = vpack.c.b16 %v360, %v359
    %v383 = vpack.c.b16 %v362, %v361
    %v384 = vpack.c.b16 %v364, %v363
    %v385 = vpack.c.b16 %v366, %v365
    %v386 = vpack.c.b16 %v368, %v367
    %v387 = vpack.c.b16 %v370, %v369
    %v388 = vpack.c.b16 %v372, %v371
    %405 = vmatprep.subr.bf16.mxu0 0
    %406 = vmatpush1.bf16.msra.mxu0 %v373
    %407 = vmatprep.subr.bf16.mxu0 0
    %408 = vmatpush1.bf16.msra.mxu0 %v374
    %409 = vmatprep.subr.bf16.mxu0 0
    %410 = vmatpush1.bf16.msra.mxu0 %v375
    %411 = vmatprep.subr.bf16.mxu0 0
    %412 = vmatpush1.bf16.msra.mxu0 %v376
    %413 = vmatprep.subr.bf16.mxu0 0
    %414 = vmatpush1.bf16.msra.mxu0 %v377
    %415 = vmatprep.subr.bf16.mxu0 0
    %416 = vmatpush1.bf16.msra.mxu0 %v378
    %417 = vmatprep.subr.bf16.mxu0 0
    %418 = vmatpush1.bf16.msra.mxu0 %v379
    %419 = vmatprep.subr.bf16.mxu0 0
    %420 = vmatpush1.bf16.msra.mxu0 %v380
    %421 = vmatprep.subr.bf16.mxu0 0
    %422 = vmatpush1.bf16.msra.mxu0 %v381
    %423 = vmatprep.subr.bf16.mxu0 0
    %424 = vmatpush1.bf16.msra.mxu0 %v382
    %425 = vmatprep.subr.bf16.mxu0 0
    %426 = vmatpush1.bf16.msra.mxu0 %v383
    %427 = vmatprep.subr.bf16.mxu0 0
    %428 = vmatpush1.bf16.msra.mxu0 %v384
    %429 = vmatprep.subr.bf16.mxu0 0
    %430 = vmatpush1.bf16.msra.mxu0 %v385
    %431 = vmatprep.subr.bf16.mxu0 0
    %432 = vmatpush1.bf16.msra.mxu0 %v386
    %433 = vmatprep.subr.bf16.mxu0 0
    %434 = vmatpush1.bf16.msra.mxu0 %v387
    %435 = vmatprep.subr.bf16.mxu0 0
    %436 = vmatpush1.bf16.msra.mxu0 %v388
    %437 = vmatprep.mubr.bf16.mxu0 %v269
    %438 = vmatmul.mubr.bf16.gmra.mrb[0].mxu0 %v268
    %v439 = vpop.f32.mrb[0].mxu0
    %v440 = vadd.f32 %v307, %v439
    %v441 = vpop.f32.mrb[0].mxu0
    %v442 = vpop.f32.mrb[0].mxu0
    %v443 = vadd.f32 %v307, %v442
    %v444 = vpop.f32.mrb[0].mxu0
    %445 = vdwg.mxu0
    %v446 = vmax.f32 %v440, 0.0
    %v447 = vmax.f32 %v443, 0.0
    %v448 = vld [vmem:[%s7] sm:$0x1]
    %v449 = vpack.c.bf16 %v447, %v446
    %v450 = vld [vmem:[#allocation2] sm:$0x1]
    %452 = vset.pattern.permute.xlu0 0
    %453 = vperm.xlu0 %452, %v450
    %v454 = vpop.permute.xlu0 %453
    %v456 = vlaneseq
    %v457 = vshrl.u32 %v456, 7
    %v458 = vsub.s32 0, %v457
    %v459 = vrot.slane %v454, %v458
    %460 = vmatprep.subr.bf16.mxu0 0
    %461 = vmatpush1.bf16.xpose.msra.mxu0 %v449
    %462 = vmatprep.subr.bf16.mxu0 0
    %463 = vmatpush1.bf16.xpose.msra.mxu0 0
    %464 = vmatprep.subr.bf16.mxu0 0
    %465 = vmatpush1.bf16.xpose.msra.mxu0 0
    %466 = vmatprep.subr.bf16.mxu0 0
    %467 = vmatpush1.bf16.xpose.msra.mxu0 0
    %468 = vmatprep.subr.bf16.mxu0 0
    %469 = vmatpush1.bf16.xpose.msra.mxu0 0
    %470 = vmatprep.subr.bf16.mxu0 0
    %471 = vmatpush1.bf16.xpose.msra.mxu0 0
    %472 = vmatprep.subr.bf16.mxu0 0
    %473 = vmatpush1.bf16.xpose.msra.mxu0 0
    %474 = vmatprep.subr.bf16.mxu0 0
    %475 = vmatpush1.bf16.xpose.msra.mxu0 0
    %476 = vmatprep.subr.bf16.mxu0 0
    %477 = vmatpush1.bf16.xpose.msra.mxu0 0
    %478 = vmatprep.subr.bf16.mxu0 0
    %479 = vmatpush1.bf16.xpose.msra.mxu0 0
    %480 = vmatprep.subr.bf16.mxu0 0
    %481 = vmatpush1.bf16.xpose.msra.mxu0 0
    %482 = vmatprep.subr.bf16.mxu0 0
    %483 = vmatpush1.bf16.xpose.msra.mxu0 0
    %484 = vmatprep.subr.bf16.mxu0 0
    %485 = vmatpush1.bf16.xpose.msra.mxu0 0
    %486 = vmatprep.subr.bf16.mxu0 0
    %487 = vmatpush1.bf16.xpose.msra.mxu0 0
    %488 = vmatprep.subr.bf16.mxu0 0
    %489 = vmatpush1.bf16.xpose.msra.mxu0 0
    %490 = vmatprep.subr.bf16.mxu0 0
    %491 = vmatpush1.bf16.xpose.msra.mxu0 0
    %492 = vmatprep.mubr.bf16.mxu0 0
    %493 = vmatmul.mubr.bf16.gmra.mrb[0].mxu0 %v448
    %v494 = vpop.f32.mrb[0].mxu0
    %v495 = vadd.f32 %v459, %v494
    %v496 = vpop.f32.mrb[0].mxu0
    %v497 = vpop.f32.mrb[0].mxu0
    %v498 = vpop.f32.mrb[0].mxu0
    %499 = vdwg.mxu0
    %vm500 = vcmask 122880
    %501 = vst.msk [vmem:[#allocation8] sm:$0x1] %vm500, %v495
    // Predicated region
    $region46: #{tpu_custom_call.1} parent=1 // pred_check
      _
    $region47: #{tpu_custom_call.1} parent=1 // pred_check_branch
      %503 = sbr.rel (0) target = $region49
    $region48: #{tpu_custom_call.1} parent=1 // pred_region
      %s505 = ssub.s32 16, 16
      %506 = vsyncadd [#allocation5], %s505
      %s508 = sshll.u32 [#allocation8], 4
      %s509 = int_to_ptr.vmem [resolvable:$true] %s508
      %511 = dma.vmem_to_hbm [thread:$0]  %s509, 16, %s9, [#allocation5]
    $region49: #{tpu_custom_call.1} parent=1 // pred_fallthru
      _
    // Predicated region
    $region50: #{tpu_custom_call.1} parent=1 // pred_check
      _
    $region51: #{tpu_custom_call.1} parent=1 // pred_check_branch
      %513 = sbr.rel (0) target = $region53
    $region52: #{tpu_custom_call.1} parent=1 // pred_region
      %514 = dma.done [#allocation5], 16
    $region53: #{tpu_custom_call.1} parent=1 // pred_fallthru
      _
    %515 = vsyncpa [#allocation4], 1
    %516 = vsyncpa [#allocation7], 1
    %517 = vsyncpa [#allocation5], 1

</llo_original>
